<compile_context>
chip_gen: v7x
topology: tpu7x:2x2x1
jax: 0.10.0
libtpu: 0.0.40
codegen_flags: <defaults>
</compile_context>

<pallas_src>
import functools

import jax
import jax.numpy as jnp
from jax.experimental import pallas as pl
from jax.experimental.pallas import tpu as pltpu

LANE = 128   # feature dims padded to a full lane width (lane-dense MXU / unmasked stores)
TM = 512     # row tile of the aggregation matmul
TK = 1024    # neighbor (reduction) tile


def _round_up(x, m):
    return ((x + m - 1) // m) * m


def _pad2d(a, rows, cols):
    return jnp.pad(a, ((0, rows - a.shape[0]), (0, cols - a.shape[1])))


def sage_conv_kernel(a_ref, x_ref, inv_deg_ref, wl_ref, wr_ref, b_ref, o_ref, acc_ref,
                     *, tm, tk, apply_relu):
    i = pl.program_id(0)
    k = pl.program_id(1)

    @pl.when(k == 0)
    def _():
        acc_ref[...] = jnp.zeros_like(acc_ref)

    # Aggregation partial product.  int8 is only the HBM storage format for A (halves the
    # dominant stream); cast to bf16 on the VPU, MXU matmul with f32 accumulation.
    a_tile = a_ref[...].astype(jnp.bfloat16)
    xk = x_ref[pl.ds(pl.multiple_of(k * tk, tk), tk), :]
    acc_ref[...] += jnp.dot(a_tile, xk, preferred_element_type=jnp.float32)

    @pl.when(k == pl.num_programs(1) - 1)
    def _():
        # Mean = counts @ x scaled by exact 1/deg in f32 (no low-precision 1/deg rounding).
        agg = acc_ref[...] * inv_deg_ref[...]
        xi = x_ref[pl.ds(pl.multiple_of(i * tm, tm), tm), :].astype(jnp.float32)
        out = (jnp.dot(agg, wl_ref[...], preferred_element_type=jnp.float32)
               + jnp.dot(xi, wr_ref[...], preferred_element_type=jnp.float32)
               + b_ref[...])
        if apply_relu:
            out = jnp.maximum(out, 0.0)
        o_ref[...] = out.astype(o_ref.dtype)


def sage_conv(a_cnt, x_res, inv_deg, w_l, w_r, b, *, tm, tk, apply_relu, out_dtype):
    """One SAGEConv layer on padded operands.

    a_cnt   : (rows_pad, cols_pad) int8,  rows_pad % tm == 0, cols_pad % tk == 0
    x_res   : (n_x, f) bf16, n_x >= max(rows_pad, cols_pad)  (kept VMEM-resident)
    inv_deg : (rows_pad, 1) f32
    w_l/w_r : (f, f) f32,  b : (1, f) f32
    """
    rows_pad, cols_pad = a_cnt.shape
    n_x, f = x_res.shape
    grid = (rows_pad // tm, cols_pad // tk)

    flops = 2 * rows_pad * cols_pad * f + 2 * 2 * rows_pad * f * f
    bytes_accessed = (
        a_cnt.size * a_cnt.dtype.itemsize          # A streamed exactly once
        + x_res.size * x_res.dtype.itemsize        # x resident: read once
        + inv_deg.size * 4
        + (w_l.size + w_r.size + b.size) * 4
        + rows_pad * f * jnp.dtype(out_dtype).itemsize
    )

    kernel = functools.partial(sage_conv_kernel, tm=tm, tk=tk, apply_relu=apply_relu)
    return pl.pallas_call(
        kernel,
        out_shape=jax.ShapeDtypeStruct((rows_pad, f), out_dtype),
        grid_spec=pltpu.PrefetchScalarGridSpec(
            num_scalar_prefetch=0,
            grid=grid,
            in_specs=[
                pl.BlockSpec((tm, tk), lambda i, k: (i, k)),    # A tile (streamed, double-buffered)
                pl.BlockSpec((n_x, f), lambda i, k: (0, 0)),    # x: whole array, VMEM-resident
                pl.BlockSpec((tm, 1), lambda i, k: (i, 0)),     # 1/deg for this row tile
                pl.BlockSpec((f, f), lambda i, k: (0, 0)),      # W_l (VMEM-resident)
                pl.BlockSpec((f, f), lambda i, k: (0, 0)),      # W_r (VMEM-resident)
                pl.BlockSpec((1, f), lambda i, k: (0, 0)),      # bias (VMEM-resident)
            ],
            out_specs=pl.BlockSpec((tm, f), lambda i, k: (i, 0)),
            scratch_shapes=[pltpu.VMEM((tm, f), jnp.float32)],
        ),
        compiler_params=pltpu.CompilerParams(
            dimension_semantics=("parallel", "arbitrary"),
            # ~10 MiB live even at TM=512/TK=1024 with a 16k-node resident x; 32 MiB is safe
            # on v5e/v6e (128 MiB phys) and v7x (64 MiB phys).
            vmem_limit_bytes=32 * 1024 * 1024,
        ),
        cost_estimate=pl.CostEstimate(
            flops=int(flops), transcendentals=0, bytes_accessed=int(bytes_accessed)),
    )(a_cnt, x_res, inv_deg, w_l, w_r, b)


def build_adjacency(edge_index, num_nodes):
    """edge_index: (2, E) int32, row 0 = source, row 1 = destination (messages src -> dst).

    Returns (counts int8 (N, N), 1/in_degree f32 (N, 1)).  Counts are built directly in the
    kernel's storage dtype (no f32 N^2 intermediate); degree is an O(E) scatter.  PyG SAGEConv
    'mean' aggregation ignores edge weights, so only connectivity matters.
    """
    src, dst = edge_index[0], edge_index[1]
    counts = jnp.zeros((num_nodes, num_nodes), jnp.int8).at[dst, src].add(1)
    deg = jnp.zeros((num_nodes,), jnp.float32).at[dst].add(1.0)
    inv_deg = jnp.where(deg > 0, 1.0 / jnp.maximum(deg, 1.0), 0.0)
    return counts, inv_deg.reshape(num_nodes, 1)


def graphsage_forward(x, edge_index, params):
    n = x.shape[0]
    out_channels = params["w_l2"].shape[1]

    # Decoupled row/col padding: rows to a tm multiple, cols to a tk multiple.
    tm = min(TM, _round_up(n, LANE))
    tk = min(TK, _round_up(n, LANE))
    rows_pad = _round_up(n, tm)
    cols_pad = _round_up(n, tk)
    n_x = max(rows_pad, cols_pad)

    counts, inv_deg = build_adjacency(edge_index, n)
    a_cnt = _pad2d(counts, rows_pad, cols_pad)                     # int8, shared by both layers
    inv_deg = _pad2d(inv_deg, rows_pad, 1)
    x_res = _pad2d(x, n_x, LANE).astype(jnp.bfloat16)

    wl1 = _pad2d(params["w_l1"], LANE, LANE)
    wr1 = _pad2d(params["w_r1"], LANE, LANE)
    b1 = _pad2d(params["b1"], 1, LANE)
    wl2 = _pad2d(params["w_l2"], LANE, LANE)
    wr2 = _pad2d(params["w_r2"], LANE, LANE)
    b2 = _pad2d(params["b2"], 1, LANE)

    # Layer 1: emit bf16 directly (halves h writeback, no extra cast pass), ReLU fused.
    h = sage_conv(a_cnt, x_res, inv_deg, wl1, wr1, b1,
                  tm=tm, tk=tk, apply_relu=True, out_dtype=jnp.bfloat16)
    if n_x > rows_pad:
        # Zero-extend h to the neighbor-index range used by layer 2's aggregation slices.
        h = jnp.pad(h, ((0, n_x - rows_pad), (0, 0)))

    out = sage_conv(a_cnt, h, inv_deg, wl2, wr2, b2,
                    tm=tm, tk=tk, apply_relu=False, out_dtype=jnp.float32)
    return out[:n, :out_channels]


def init_params(key, in_channels, hidden_channels, out_channels):
    ks = jax.random.split(key, 4)
    scale1 = 1.0 / jnp.sqrt(jnp.float32(max(in_channels, 1)))
    scale2 = 1.0 / jnp.sqrt(jnp.float32(max(hidden_channels, 1)))
    return {
        "w_l1": scale1 * jax.random.normal(ks[0], (in_channels, hidden_channels), jnp.float32),
        "w_r1": scale1 * jax.random.normal(ks[1], (in_channels, hidden_channels), jnp.float32),
        "b1": jnp.zeros((1, hidden_channels), jnp.float32),
        "w_l2": scale2 * jax.random.normal(ks[2], (hidden_channels, out_channels), jnp.float32),
        "w_r2": scale2 * jax.random.normal(ks[3], (hidden_channels, out_channels), jnp.float32),
        "b2": jnp.zeros((1, out_channels), jnp.float32),
    }


def graphsage_reference(x, edge_index, params):
    """Pure-JAX f32 reference mirroring PyG SAGEConv('mean') semantics."""
    n = x.shape[0]
    src, dst = edge_index[0], edge_index[1]
    counts = jnp.zeros((n, n), jnp.float32).at[dst, src].add(1.0)
    deg = counts.sum(axis=1, keepdims=True)
    a = jnp.where(deg > 0, counts / jnp.maximum(deg, 1.0), 0.0)

    def conv(xx, wl, wr, b):
        return (a @ xx) @ wl + b + xx @ wr

    h = jax.nn.relu(conv(x, params["w_l1"], params["w_r1"], params["b1"]))
    return conv(h, params["w_l2"], params["w_r2"], params["b2"])


if __name__ == "__main__":
    key = jax.random.PRNGKey(0)

    # Small synthetic bipartite user -> group graph (deterministic), mirroring the script.
    num_users, num_groups = 16, 16
    num_nodes = num_users + num_groups
    num_edges = 64
    in_channels, hidden_channels, out_channels = 1, 16, 8

    k_edges_u, k_edges_g, k_params = jax.random.split(key, 3)
    src = jax.random.randint(k_edges_u, (num_edges,), 0, num_users, dtype=jnp.int32)
    dst = jax.random.randint(
        k_edges_g, (num_edges,), num_users, num_nodes, dtype=jnp.int32
    )
    edge_index = jnp.stack([src, dst], axis=0)  # (2, E): user_idx -> group_idx

    # x = ones((num_nodes, 1)) exactly as in the original script.
    x = jnp.ones((num_nodes, in_channels), jnp.float32)

    params = init_params(k_params, in_channels, hidden_channels, out_channels)

    out = jax.block_until_ready(graphsage_forward(x, edge_index, params))

    ref = graphsage_reference(x, edge_index, params)
    assert out.shape == (num_nodes, out_channels)
    assert bool(jnp.all(jnp.isfinite(out)))
    # Exact int8 adjacency + f32 1/deg + f32 weights: only bf16 feature/h storage rounds,
    # so the tolerance can be tighter than the previous bf16-adjacency version.
    err = float(jnp.max(jnp.abs(out - ref)))
    assert jnp.allclose(out, ref, atol=3e-2, rtol=3e-2), f"max abs err {err}"

    print("KERNEL_OK")
</pallas_src>

<mosaic_0001>
module attributes {stable_mosaic.version = 11 : i64} {
  func.func @sage_conv_kernel(%arg0: i32, %arg1: i32, %arg2: memref<128x128xi8, #tpu.memory_space<vmem>>, %arg3: memref<128x128xbf16, #tpu.memory_space<vmem>>, %arg4: memref<128x1xf32, #tpu.memory_space<vmem>>, %arg5: memref<128x128xf32, #tpu.memory_space<vmem>>, %arg6: memref<128x128xf32, #tpu.memory_space<vmem>>, %arg7: memref<1x128xf32, #tpu.memory_space<vmem>>, %arg8: memref<128x128xbf16, #tpu.memory_space<vmem>>, %arg9: memref<128x128xf32, #tpu.memory_space<vmem>>) attributes {dimension_semantics = [#tpu.dimension_semantics<parallel>, #tpu.dimension_semantics<arbitrary>], iteration_bounds = array<i64: 1, 1>, scalar_prefetch = 0 : i64, scratch_operands = 1 : i64, tpu.core_type = #tpu.core_type<tc>, window_params = [{transform_indices = @transform_0, window_bounds = array<i64: 128, 128>}, {pipeline_mode = #tpu.pipeline_mode<synchronous>, transform_indices = @transform_1, window_bounds = array<i64: 128, 128>}, {transform_indices = @transform_2, window_bounds = array<i64: 128, 1>}, {pipeline_mode = #tpu.pipeline_mode<synchronous>, transform_indices = @transform_3, window_bounds = array<i64: 128, 128>}, {pipeline_mode = #tpu.pipeline_mode<synchronous>, transform_indices = @transform_4, window_bounds = array<i64: 128, 128>}, {pipeline_mode = #tpu.pipeline_mode<synchronous>, transform_indices = @transform_5, window_bounds = array<i64: 1, 128>}, {transform_indices = @transform_6, window_bounds = array<i64: 128, 128>}]} {
    %c0_i32 = arith.constant 0 : i32
    %0 = arith.cmpi eq, %arg1, %c0_i32 : i32
    %1 = arith.extui %0 : i1 to i32
    %c0_i32_0 = arith.constant 0 : i32
    %2 = arith.cmpi ne, %1, %c0_i32_0 : i32
    scf.if %2 {
      %cst_9 = arith.constant 0.000000e+00 : f32
      %16 = vector.broadcast %cst_9 : f32 to vector<128x128xf32>
      %c0_10 = arith.constant 0 : index
      %c0_11 = arith.constant 0 : index
      %17 = vector.load %arg9[%c0_10, %c0_11] : memref<128x128xf32, #tpu.memory_space<vmem>>, vector<128x128xf32>
      tpu.vector_store %arg9[%c0_10, %c0_11], %16 {strides = array<i32>} : memref<128x128xf32, #tpu.memory_space<vmem>>, vector<128x128xf32>,
    } else {
    }
    %c0 = arith.constant 0 : index
    %c0_1 = arith.constant 0 : index
    %3 = vector.load %arg2[%c0, %c0_1] : memref<128x128xi8, #tpu.memory_space<vmem>>, vector<128x128xi8>
    %4 = arith.sitofp %3 : vector<128x128xi8> to vector<128x128xbf16>
    %c128_i32 = arith.constant 128 : i32
    %5 = arith.muli %arg1, %c128_i32 : i32
    %6 = tpu.assume_multiple %5, 128 : i32
    %7 = arith.index_cast %6 : i32 to index
    %c0_2 = arith.constant 0 : index
    %8 = vector.load %arg3[%7, %c0_2] : memref<128x128xbf16, #tpu.memory_space<vmem>>, vector<128x128xbf16>
    %c0_3 = arith.constant 0 : index
    %c0_4 = arith.constant 0 : index
    %9 = vector.load %arg9[%c0_3, %c0_4] : memref<128x128xf32, #tpu.memory_space<vmem>>, vector<128x128xf32>
    %cst = arith.constant dense<0.000000e+00> : vector<128x128xf32>
    %10 = tpu.matmul %4, %8, %cst {dimension_numbers = #tpu.dot_dimension_numbers<[1], [0], [0], [1], [0, 0, 1, 1], [], []>} : vector<128x128xbf16>, vector<128x128xbf16>, vector<128x128xf32> -> vector<128x128xf32>
    %11 = arith.addf %9, %10 : vector<128x128xf32>
    %c0_5 = arith.constant 0 : index
    %c0_6 = arith.constant 0 : index
    %12 = vector.load %arg9[%c0_5, %c0_6] : memref<128x128xf32, #tpu.memory_space<vmem>>, vector<128x128xf32>
    tpu.vector_store %arg9[%c0_5, %c0_6], %11 {strides = array<i32>} : memref<128x128xf32, #tpu.memory_space<vmem>>, vector<128x128xf32>,
    %c0_i32_7 = arith.constant 0 : i32
    %13 = arith.cmpi eq, %arg1, %c0_i32_7 : i32
    %14 = arith.extui %13 : i1 to i32
    %c0_i32_8 = arith.constant 0 : i32
    %15 = arith.cmpi ne, %14, %c0_i32_8 : i32
    scf.if %15 {
      %c0_9 = arith.constant 0 : index
      %c0_10 = arith.constant 0 : index
      %16 = vector.load %arg9[%c0_9, %c0_10] : memref<128x128xf32, #tpu.memory_space<vmem>>, vector<128x128xf32>
      %c0_11 = arith.constant 0 : index
      %c0_12 = arith.constant 0 : index
      %17 = vector.load %arg4[%c0_11, %c0_12] : memref<128x1xf32, #tpu.memory_space<vmem>>, vector<128x1xf32>
      %18 = vector.broadcast %17 : vector<128x1xf32> to vector<128x128xf32>
      %19 = arith.mulf %16, %18 : vector<128x128xf32>
      %c128_i32_13 = arith.constant 128 : i32
      %20 = arith.muli %arg0, %c128_i32_13 : i32
      %21 = tpu.assume_multiple %20, 128 : i32
      %22 = arith.index_cast %21 : i32 to index
      %c0_14 = arith.constant 0 : index
      %23 = vector.load %arg3[%22, %c0_14] : memref<128x128xbf16, #tpu.memory_space<vmem>>, vector<128x128xbf16>
      %24 = arith.extf %23 : vector<128x128xbf16> to vector<128x128xf32>
      %c0_15 = arith.constant 0 : index
      %c0_16 = arith.constant 0 : index
      %25 = vector.load %arg5[%c0_15, %c0_16] : memref<128x128xf32, #tpu.memory_space<vmem>>, vector<128x128xf32>
      %cst_17 = arith.constant dense<0.000000e+00> : vector<128x128xf32>
      %26 = tpu.matmul %19, %25, %cst_17 {dimension_numbers = #tpu.dot_dimension_numbers<[1], [0], [0], [1], [0, 0, 1, 1], [], []>} : vector<128x128xf32>, vector<128x128xf32>, vector<128x128xf32> -> vector<128x128xf32>
      %c0_18 = arith.constant 0 : index
      %c0_19 = arith.constant 0 : index
      %27 = vector.load %arg6[%c0_18, %c0_19] : memref<128x128xf32, #tpu.memory_space<vmem>>, vector<128x128xf32>
      %cst_20 = arith.constant dense<0.000000e+00> : vector<128x128xf32>
      %28 = tpu.matmul %24, %27, %cst_20 {dimension_numbers = #tpu.dot_dimension_numbers<[1], [0], [0], [1], [0, 0, 1, 1], [], []>} : vector<128x128xf32>, vector<128x128xf32>, vector<128x128xf32> -> vector<128x128xf32>
      %29 = arith.addf %26, %28 : vector<128x128xf32>
      %c0_21 = arith.constant 0 : index
      %c0_22 = arith.constant 0 : index
      %30 = vector.load %arg7[%c0_21, %c0_22] : memref<1x128xf32, #tpu.memory_space<vmem>>, vector<1x128xf32>
      %31 = vector.broadcast %30 : vector<1x128xf32> to vector<128x128xf32>
      %32 = arith.addf %29, %31 : vector<128x128xf32>
      %cst_23 = arith.constant 0.000000e+00 : f32
      %33 = vector.broadcast %cst_23 : f32 to vector<128x128xf32>
      %34 = arith.maximumf %32, %33 : vector<128x128xf32>
      %35 = arith.truncf %34 : vector<128x128xf32> to vector<128x128xbf16>
      %c0_24 = arith.constant 0 : index
      %c0_25 = arith.constant 0 : index
      %36 = vector.load %arg8[%c0_24, %c0_25] : memref<128x128xbf16, #tpu.memory_space<vmem>>, vector<128x128xbf16>
      tpu.vector_store %arg8[%c0_24, %c0_25], %35 {strides = array<i32>} : memref<128x128xbf16, #tpu.memory_space<vmem>>, vector<128x128xbf16>,
    } else {
    }
    return
  }
  func.func @transform_0(%arg0: i32, %arg1: i32) -> (i32, i32) {
    %c0_i32 = arith.constant 0 : i32
    return %arg0, %arg1 : i32, i32
  }
  func.func @transform_1(%arg0: i32, %arg1: i32) -> (i32, i32) {
    %c0_i32 = arith.constant 0 : i32
    %c0_i32_0 = arith.constant 0 : i32
    %c0_i32_1 = arith.constant 0 : i32
    return %c0_i32, %c0_i32_0 : i32, i32
  }
  func.func @transform_2(%arg0: i32, %arg1: i32) -> (i32, i32) {
    %c0_i32 = arith.constant 0 : i32
    %c0_i32_0 = arith.constant 0 : i32
    return %arg0, %c0_i32 : i32, i32
  }
  func.func @transform_3(%arg0: i32, %arg1: i32) -> (i32, i32) {
    %c0_i32 = arith.constant 0 : i32
    %c0_i32_0 = arith.constant 0 : i32
    %c0_i32_1 = arith.constant 0 : i32
    return %c0_i32, %c0_i32_0 : i32, i32
  }
  func.func @transform_4(%arg0: i32, %arg1: i32) -> (i32, i32) {
    %c0_i32 = arith.constant 0 : i32
    %c0_i32_0 = arith.constant 0 : i32
    %c0_i32_1 = arith.constant 0 : i32
    return %c0_i32, %c0_i32_0 : i32, i32
  }
  func.func @transform_5(%arg0: i32, %arg1: i32) -> (i32, i32) {
    %c0_i32 = arith.constant 0 : i32
    %c0_i32_0 = arith.constant 0 : i32
    %c0_i32_1 = arith.constant 0 : i32
    return %c0_i32, %c0_i32_0 : i32, i32
  }
  func.func @transform_6(%arg0: i32, %arg1: i32) -> (i32, i32) {
    %c0_i32 = arith.constant 0 : i32
    %c0_i32_0 = arith.constant 0 : i32
    return %arg0, %c0_i32 : i32, i32
  }
}

</mosaic_0001>

<llo_original>
// kernel: tpu_custom_call.1
$region0: #{tpu_custom_call.1}
  #allocation0 [shape = 'u32[]', space=smem, size = 0x4, offset = 0x4, fixed_abs, tag = 'smem constant byte address 0x4 - core index']
  #allocation1 [shape = 'u32[144,128]{1,0:T(1,128)}', space=vmem, size = 0x12000, scoped, tag = 'internal scratch']
  #allocation2 [shape = 'f32[128,128]{1,0:T(8,128)}', space=vmem, size = 0x10000, scoped, tag = 'scratch operand']
  %s0 = inlined_call_operand.hbm [shape: s8[128,128], index: 0, kind: input, shape index: {}]
  %s1 = inlined_call_operand.hbm [shape: bf16[128,128], index: 1, kind: input, shape index: {}]
  %s2 = inlined_call_operand.vmem [shape: f32[128,1], index: 2, kind: input, shape index: {}]
  %s3 = inlined_call_operand.vmem [shape: f32[128,128], index: 3, kind: input, shape index: {}]
  %s4 = inlined_call_operand.hbm [shape: f32[128,128], index: 4, kind: input, shape index: {}]
  %s5 = inlined_call_operand.vmem [shape: f32[1,128], index: 5, kind: input, shape index: {}]
  %s6 = inlined_call_operand.hbm [shape: bf16[128,128], index: 6, kind: output, shape index: {}]
  %s7 = sld [smem:[#allocation0]]
  $region54: #{tpu_custom_call.1} parent=0
    _
  %s9 = ssub.s32 1, %s7
  %s10 = scalar_select 0, %s9, %s7
  $region1: #{tpu_custom_call.1} parent=0
    #allocation3 [shape = 'u8[16384]{0}', space=vmem, size = 0x4000, scoped, tag = 'input window, operand 0, single buffered']
    #allocation4 [shape = 's32[1]{0}', space=sflag, size = 0x4, scoped, tag = 'scoped memory for tpu_custom_call.1']
    #allocation5 [shape = 's32[1]{0}', space=sflag, size = 0x4, scoped, tag = 'scoped memory for tpu_custom_call.1']
    #allocation6 [shape = 'u8[32768]{0}', space=vmem, size = 0x8000, scoped, tag = 'input window, operand 1, single buffered']
    #allocation7 [shape = 's32[1]{0}', space=sflag, size = 0x4, scoped, tag = 'scoped memory for tpu_custom_call.1']
    #allocation8 [shape = 'u8[65536]{0}', space=vmem, size = 0x10000, scoped, tag = 'input window, operand 4, single buffered']
    #allocation9 [shape = 'u8[32768]{0}', space=vmem, size = 0x8000, scoped, tag = 'output window, operand 0, single buffered']
    %11 = vsyncpa [#allocation4], 0
    %12 = vsyncpa [#allocation7], 0
    %13 = vsyncpa [#allocation5], 0
    // Predicated region
    $region2: #{tpu_custom_call.1} parent=1 // pred_check
      _
    $region3: #{tpu_custom_call.1} parent=1 // pred_check_branch
      %15 = sbr.rel (0) target = $region5
    $region4: #{tpu_custom_call.1} parent=1 // pred_region
      %s17 = ssub.s32 512, 512
      %18 = vsyncadd [#allocation4], %s17
      %s19 = sshll.u32 [#allocation3], 4
      %s20 = int_to_ptr.vmem [resolvable:$true] %s19
      %25 = dma.hbm_to_vmem [thread:$0]  %s0, 512, %s20, [#allocation4], 128, 128, 8
    $region5: #{tpu_custom_call.1} parent=1 // pred_fallthru
      _
    // Predicated region
    $region6: #{tpu_custom_call.1} parent=1 // pred_check
      _
    $region7: #{tpu_custom_call.1} parent=1 // pred_check_branch
      %27 = sbr.rel (0) target = $region9
    $region8: #{tpu_custom_call.1} parent=1 // pred_region
      %s29 = ssub.s32 1024, 1024
      %30 = vsyncadd [#allocation7], %s29
      %s31 = sshll.u32 [#allocation6], 4
      %s32 = int_to_ptr.vmem [resolvable:$true] %s31
      %37 = dma.hbm_to_vmem [thread:$0]  %s1, 1024, %s32, [#allocation7], 64, 64, 4
    $region9: #{tpu_custom_call.1} parent=1 // pred_fallthru
      _
    // Predicated region
    $region10: #{tpu_custom_call.1} parent=1 // pred_check
      _
    $region11: #{tpu_custom_call.1} parent=1 // pred_check_branch
      %39 = sbr.rel (0) target = $region13
    $region12: #{tpu_custom_call.1} parent=1 // pred_region
      _
    $region13: #{tpu_custom_call.1} parent=1 // pred_fallthru
      _
    // Predicated region
    $region14: #{tpu_custom_call.1} parent=1 // pred_check
      _
    $region15: #{tpu_custom_call.1} parent=1 // pred_check_branch
      %41 = sbr.rel (0) target = $region17
    $region16: #{tpu_custom_call.1} parent=1 // pred_region
      _
    $region17: #{tpu_custom_call.1} parent=1 // pred_fallthru
      _
    // Predicated region
    $region18: #{tpu_custom_call.1} parent=1 // pred_check
      _
    $region19: #{tpu_custom_call.1} parent=1 // pred_check_branch
      %43 = sbr.rel (0) target = $region21
    $region20: #{tpu_custom_call.1} parent=1 // pred_region
      %s45 = ssub.s32 2048, 2048
      %46 = vsyncadd [#allocation7], %s45
      %s47 = sshll.u32 [#allocation8], 4
      %s48 = int_to_ptr.vmem [resolvable:$true] %s47
      %53 = dma.hbm_to_vmem [thread:$0]  %s4, 2048, %s48, [#allocation7], 128, 128, 8
    $region21: #{tpu_custom_call.1} parent=1 // pred_fallthru
      _
    // Predicated region
    $region22: #{tpu_custom_call.1} parent=1 // pred_check
      _
    $region23: #{tpu_custom_call.1} parent=1 // pred_check_branch
      %55 = sbr.rel (0) target = $region25
    $region24: #{tpu_custom_call.1} parent=1 // pred_region
      _
    $region25: #{tpu_custom_call.1} parent=1 // pred_fallthru
      _
    // Predicated region
    $region26: #{tpu_custom_call.1} parent=1 // pred_check
      _
    $region27: #{tpu_custom_call.1} parent=1 // pred_check_branch
      %57 = sbr.rel (0) target = $region29
    $region28: #{tpu_custom_call.1} parent=1 // pred_region
      %58 = dma.done [#allocation4], 512
    $region29: #{tpu_custom_call.1} parent=1 // pred_fallthru
      _
    // Predicated region
    $region30: #{tpu_custom_call.1} parent=1 // pred_check
      _
    $region31: #{tpu_custom_call.1} parent=1 // pred_check_branch
      %60 = sbr.rel (0) target = $region33
    $region32: #{tpu_custom_call.1} parent=1 // pred_region
      %61 = dma.done [#allocation7], 1024
    $region33: #{tpu_custom_call.1} parent=1 // pred_fallthru
      _
    // Predicated region
    $region34: #{tpu_custom_call.1} parent=1 // pred_check
      _
    $region35: #{tpu_custom_call.1} parent=1 // pred_check_branch
      %63 = sbr.rel (0) target = $region37
    $region36: #{tpu_custom_call.1} parent=1 // pred_region
      %64 = dma.done [#allocation7], 2048
    $region37: #{tpu_custom_call.1} parent=1 // pred_fallthru
      _
    %p66 = scmp.eq.s32.totalorder 0, 0
    // Predicated region
    $region38: #{tpu_custom_call.1} parent=1 // pred_check
      %p67 = pneg %p66
    $region39: #{tpu_custom_call.1} parent=1 // pred_check_branch
      %69 = sbr.rel (%p67) target = $region41
    $region40: #{tpu_custom_call.1} parent=1 // pred_region
      %70 = vst [vmem:[#allocation2] sm:$0xff] 0.0
      %71 = vst [vmem:[#allocation2 + $0x8] sm:$0xff] 0.0
      %72 = vst [vmem:[#allocation2 + $0x10] sm:$0xff] 0.0
      %73 = vst [vmem:[#allocation2 + $0x18] sm:$0xff] 0.0
      %74 = vst [vmem:[#allocation2 + $0x20] sm:$0xff] 0.0
      %75 = vst [vmem:[#allocation2 + $0x28] sm:$0xff] 0.0
      %76 = vst [vmem:[#allocation2 + $0x30] sm:$0xff] 0.0
      %77 = vst [vmem:[#allocation2 + $0x38] sm:$0xff] 0.0
      %78 = vst [vmem:[#allocation2 + $0x40] sm:$0xff] 0.0
      %79 = vst [vmem:[#allocation2 + $0x48] sm:$0xff] 0.0
      %80 = vst [vmem:[#allocation2 + $0x50] sm:$0xff] 0.0
      %81 = vst [vmem:[#allocation2 + $0x58] sm:$0xff] 0.0
      %82 = vst [vmem:[#allocation2 + $0x60] sm:$0xff] 0.0
      %83 = vst [vmem:[#allocation2 + $0x68] sm:$0xff] 0.0
      %84 = vst [vmem:[#allocation2 + $0x70] sm:$0xff] 0.0
      %85 = vst [vmem:[#allocation2 + $0x78] sm:$0xff] 0.0
    $region41: #{tpu_custom_call.1} parent=1 // pred_fallthru
      _
    %v86 = vld [vmem:[#allocation3] sm:$0xff]
    %v87 = vld [vmem:[#allocation3 + $0x8] sm:$0xff]
    %v88 = vld [vmem:[#allocation3 + $0x10] sm:$0xff]
    %v89 = vld [vmem:[#allocation3 + $0x18] sm:$0xff]
    %v90 = vunpack.c.l.s8.bf16 %v86
    %v91 = vunpack.c.h.s8.bf16 %v86
    %v92 = vunpack.c.l.s8.bf16 %v87
    %v93 = vunpack.c.h.s8.bf16 %v87
    %v94 = vunpack.c.l.s8.bf16 %v88
    %v95 = vunpack.c.h.s8.bf16 %v88
    %v96 = vunpack.c.l.s8.bf16 %v89
    %v97 = vunpack.c.h.s8.bf16 %v89
    %s98 = smul.u32 0, 128
    %s99 = sshra.s32 %s98, 3
    %s100 = sand.u32 %s98, 7
    %s101 = smul.addr %s99, 4
    %s102 = scalar_lea.vmem [#allocation6], %s101
    %v103 = vld [vmem:[%s102] sm:$0xf]
    %v104 = vld [vmem:[%s102 + $0x4] sm:$0xf]
    %v105 = vld [vmem:[%s102 + $0x8] sm:$0xf]
    %v106 = vld [vmem:[%s102 + $0xc] sm:$0xf]
    %v107 = vld [vmem:[%s102 + $0x10] sm:$0xf]
    %v108 = vld [vmem:[%s102 + $0x14] sm:$0xf]
    %v109 = vld [vmem:[%s102 + $0x18] sm:$0xf]
    %v110 = vld [vmem:[%s102 + $0x1c] sm:$0xf]
    %v111 = vld [vmem:[%s102 + $0x20] sm:$0xf]
    %v112 = vld [vmem:[%s102 + $0x24] sm:$0xf]
    %v113 = vld [vmem:[%s102 + $0x28] sm:$0xf]
    %v114 = vld [vmem:[%s102 + $0x2c] sm:$0xf]
    %v115 = vld [vmem:[%s102 + $0x30] sm:$0xf]
    %v116 = vld [vmem:[%s102 + $0x34] sm:$0xf]
    %v117 = vld [vmem:[%s102 + $0x38] sm:$0xf]
    %v118 = vld [vmem:[%s102 + $0x3c] sm:$0xf]
    %v119 = vld [vmem:[#allocation2] sm:$0xff]
    %v120 = vld [vmem:[#allocation2 + $0x8] sm:$0xff]
    %v121 = vld [vmem:[#allocation2 + $0x10] sm:$0xff]
    %v122 = vld [vmem:[#allocation2 + $0x18] sm:$0xff]
    %v123 = vld [vmem:[#allocation2 + $0x20] sm:$0xff]
    %v124 = vld [vmem:[#allocation2 + $0x28] sm:$0xff]
    %v125 = vld [vmem:[#allocation2 + $0x30] sm:$0xff]
    %v126 = vld [vmem:[#allocation2 + $0x38] sm:$0xff]
    %v127 = vld [vmem:[#allocation2 + $0x40] sm:$0xff]
    %v128 = vld [vmem:[#allocation2 + $0x48] sm:$0xff]
    %v129 = vld [vmem:[#allocation2 + $0x50] sm:$0xff]
    %v130 = vld [vmem:[#allocation2 + $0x58] sm:$0xff]
    %v131 = vld [vmem:[#allocation2 + $0x60] sm:$0xff]
    %v132 = vld [vmem:[#allocation2 + $0x68] sm:$0xff]
    %v133 = vld [vmem:[#allocation2 + $0x70] sm:$0xff]
    %v134 = vld [vmem:[#allocation2 + $0x78] sm:$0xff]
    %v151 = vunpack.c.l.b16 %v103
    %v152 = vunpack.c.l.b16 %v104
    %v153 = vunpack.c.l.b16 %v105
    %v154 = vunpack.c.l.b16 %v106
    %v155 = vunpack.c.l.b16 %v107
    %v156 = vunpack.c.l.b16 %v108
    %v157 = vunpack.c.l.b16 %v109
    %v158 = vunpack.c.l.b16 %v110
    %v159 = vunpack.c.l.b16 %v111
    %v160 = vunpack.c.l.b16 %v112
    %v161 = vunpack.c.l.b16 %v113
    %v162 = vunpack.c.l.b16 %v114
    %v163 = vunpack.c.l.b16 %v115
    %v164 = vunpack.c.l.b16 %v116
    %v165 = vunpack.c.l.b16 %v117
    %v166 = vunpack.c.l.b16 %v118
    %v167 = vpack.c.b16 %v152, %v151
    %v168 = vpack.c.b16 %v154, %v153
    %v169 = vpack.c.b16 %v156, %v155
    %v170 = vpack.c.b16 %v158, %v157
    %v171 = vpack.c.b16 %v160, %v159
    %v172 = vpack.c.b16 %v162, %v161
    %v173 = vpack.c.b16 %v164, %v163
    %v174 = vpack.c.b16 %v166, %v165
    %183 = vmatprep.subr.bf16.mxu0 0
    %184 = vmatpush1.bf16.msra.mxu0 %v167
    %185 = vmatprep.subr.bf16.mxu0 0
    %186 = vmatpush1.bf16.msra.mxu0 %v168
    %187 = vmatprep.subr.bf16.mxu0 0
    %188 = vmatpush1.bf16.msra.mxu0 %v169
    %189 = vmatprep.subr.bf16.mxu0 0
    %190 = vmatpush1.bf16.msra.mxu0 %v170
    %191 = vmatprep.subr.bf16.mxu0 0
    %192 = vmatpush1.bf16.msra.mxu0 %v171
    %193 = vmatprep.subr.bf16.mxu0 0
    %194 = vmatpush1.bf16.msra.mxu0 %v172
    %195 = vmatprep.subr.bf16.mxu0 0
    %196 = vmatpush1.bf16.msra.mxu0 %v173
    %197 = vmatprep.subr.bf16.mxu0 0
    %198 = vmatpush1.bf16.msra.mxu0 %v174
    %199 = vmatprep.subr.bf16.mxu0 0
    %200 = vmatpush1.bf16.msra.mxu0 0
    %201 = vmatprep.subr.bf16.mxu0 0
    %202 = vmatpush1.bf16.msra.mxu0 0
    %203 = vmatprep.subr.bf16.mxu0 0
    %204 = vmatpush1.bf16.msra.mxu0 0
    %205 = vmatprep.subr.bf16.mxu0 0
    %206 = vmatpush1.bf16.msra.mxu0 0
    %207 = vmatprep.subr.bf16.mxu0 0
    %208 = vmatpush1.bf16.msra.mxu0 0
    %209 = vmatprep.subr.bf16.mxu0 0
    %210 = vmatpush1.bf16.msra.mxu0 0
    %211 = vmatprep.subr.bf16.mxu0 0
    %212 = vmatpush1.bf16.msra.mxu0 0
    %213 = vmatprep.subr.bf16.mxu0 0
    %214 = vmatpush1.bf16.msra.mxu0 0
    %215 = vmatprep.mubr.bf16.mxu0 0
    %216 = vmatmul.mubr.bf16.gmra.mrb[0].mxu0 %v90
    %v217 = vpop.f32.mrb[0].mxu0
    %v218 = vadd.f32 0.0, %v217
    %v219 = vpop.f32.mrb[0].mxu0
    %v220 = vpop.f32.mrb[0].mxu0
    %v221 = vadd.f32 0.0, %v220
    %v222 = vpop.f32.mrb[0].mxu0
    %223 = vmatprep.mubr.bf16.mxu0 0
    %224 = vmatmul.mubr.bf16.gmra.mrb[0].mxu0 %v91
    %v225 = vpop.f32.mrb[0].mxu0
    %v226 = vadd.f32 0.0, %v225
    %v227 = vpop.f32.mrb[0].mxu0
    %v228 = vpop.f32.mrb[0].mxu0
    %v229 = vadd.f32 0.0, %v228
    %v230 = vpop.f32.mrb[0].mxu0
    %231 = vmatprep.mubr.bf16.mxu0 0
    %232 = vmatmul.mubr.bf16.gmra.mrb[0].mxu0 %v92
    %v233 = vpop.f32.mrb[0].mxu0
    %v234 = vadd.f32 0.0, %v233
    %v235 = vpop.f32.mrb[0].mxu0
    %v236 = vpop.f32.mrb[0].mxu0
    %v237 = vadd.f32 0.0, %v236
    %v238 = vpop.f32.mrb[0].mxu0
    %239 = vmatprep.mubr.bf16.mxu0 0
    %240 = vmatmul.mubr.bf16.gmra.mrb[0].mxu0 %v93
    %v241 = vpop.f32.mrb[0].mxu0
    %v242 = vadd.f32 0.0, %v241
    %v243 = vpop.f32.mrb[0].mxu0
    %v244 = vpop.f32.mrb[0].mxu0
    %v245 = vadd.f32 0.0, %v244
    %v246 = vpop.f32.mrb[0].mxu0
    %247 = vmatprep.mubr.bf16.mxu0 0
    %248 = vmatmul.mubr.bf16.gmra.mrb[0].mxu0 %v94
    %v249 = vpop.f32.mrb[0].mxu0
    %v250 = vadd.f32 0.0, %v249
    %v251 = vpop.f32.mrb[0].mxu0
    %v252 = vpop.f32.mrb[0].mxu0
    %v253 = vadd.f32 0.0, %v252
    %v254 = vpop.f32.mrb[0].mxu0
    %255 = vmatprep.mubr.bf16.mxu0 0
    %256 = vmatmul.mubr.bf16.gmra.mrb[0].mxu0 %v95
    %v257 = vpop.f32.mrb[0].mxu0
    %v258 = vadd.f32 0.0, %v257
    %v259 = vpop.f32.mrb[0].mxu0
    %v260 = vpop.f32.mrb[0].mxu0
    %v261 = vadd.f32 0.0, %v260
    %v262 = vpop.f32.mrb[0].mxu0
    %263 = vmatprep.mubr.bf16.mxu0 0
    %264 = vmatmul.mubr.bf16.gmra.mrb[0].mxu0 %v96
    %v265 = vpop.f32.mrb[0].mxu0
    %v266 = vadd.f32 0.0, %v265
    %v267 = vpop.f32.mrb[0].mxu0
    %v268 = vpop.f32.mrb[0].mxu0
    %v269 = vadd.f32 0.0, %v268
    %v270 = vpop.f32.mrb[0].mxu0
    %271 = vmatprep.mubr.bf16.mxu0 0
    %272 = vmatmul.mubr.bf16.gmra.mrb[0].mxu0 %v97
    %v273 = vpop.f32.mrb[0].mxu0
    %v274 = vadd.f32 0.0, %v273
    %v275 = vpop.f32.mrb[0].mxu0
    %v276 = vpop.f32.mrb[0].mxu0
    %v277 = vadd.f32 0.0, %v276
    %v278 = vpop.f32.mrb[0].mxu0
    %279 = vdwg.mxu0
    %v280 = vadd.f32 %v119, %v218
    %v281 = vadd.f32 %v120, %v221
    %v282 = vadd.f32 %v121, %v226
    %v283 = vadd.f32 %v122, %v229
    %v284 = vadd.f32 %v123, %v234
    %v285 = vadd.f32 %v124, %v237
    %v286 = vadd.f32 %v125, %v242
    %v287 = vadd.f32 %v126, %v245
    %v288 = vadd.f32 %v127, %v250
    %v289 = vadd.f32 %v128, %v253
    %v290 = vadd.f32 %v129, %v258
    %v291 = vadd.f32 %v130, %v261
    %v292 = vadd.f32 %v131, %v266
    %v293 = vadd.f32 %v132, %v269
    %v294 = vadd.f32 %v133, %v274
    %v295 = vadd.f32 %v134, %v277
    %296 = vst [vmem:[#allocation2] sm:$0xff] %v280
    %297 = vst [vmem:[#allocation2 + $0x8] sm:$0xff] %v281
    %298 = vst [vmem:[#allocation2 + $0x10] sm:$0xff] %v282
    %299 = vst [vmem:[#allocation2 + $0x18] sm:$0xff] %v283
    %300 = vst [vmem:[#allocation2 + $0x20] sm:$0xff] %v284
    %301 = vst [vmem:[#allocation2 + $0x28] sm:$0xff] %v285
    %302 = vst [vmem:[#allocation2 + $0x30] sm:$0xff] %v286
    %303 = vst [vmem:[#allocation2 + $0x38] sm:$0xff] %v287
    %304 = vst [vmem:[#allocation2 + $0x40] sm:$0xff] %v288
    %305 = vst [vmem:[#allocation2 + $0x48] sm:$0xff] %v289
    %306 = vst [vmem:[#allocation2 + $0x50] sm:$0xff] %v290
    %307 = vst [vmem:[#allocation2 + $0x58] sm:$0xff] %v291
    %308 = vst [vmem:[#allocation2 + $0x60] sm:$0xff] %v292
    %309 = vst [vmem:[#allocation2 + $0x68] sm:$0xff] %v293
    %310 = vst [vmem:[#allocation2 + $0x70] sm:$0xff] %v294
    %311 = vst [vmem:[#allocation2 + $0x78] sm:$0xff] %v295
    // Predicated region
    $region42: #{tpu_custom_call.1} parent=1 // pred_check
      %p312 = pneg %p66
    $region43: #{tpu_custom_call.1} parent=1 // pred_check_branch
      %314 = sbr.rel (%p312) target = $region45
    $region44: #{tpu_custom_call.1} parent=1 // pred_region
      %v315 = vld [vmem:[#allocation2] sm:$0xff]
      %v316 = vld [vmem:[#allocation2 + $0x8] sm:$0xff]
      %v317 = vld [vmem:[#allocation2 + $0x10] sm:$0xff]
      %v318 = vld [vmem:[#allocation2 + $0x18] sm:$0xff]
      %v319 = vld [vmem:[#allocation2 + $0x20] sm:$0xff]
      %v320 = vld [vmem:[#allocation2 + $0x28] sm:$0xff]
      %v321 = vld [vmem:[#allocation2 + $0x30] sm:$0xff]
      %v322 = vld [vmem:[#allocation2 + $0x38] sm:$0xff]
      %v323 = vld [vmem:[#allocation2 + $0x40] sm:$0xff]
      %v324 = vld [vmem:[#allocation2 + $0x48] sm:$0xff]
      %v325 = vld [vmem:[#allocation2 + $0x50] sm:$0xff]
      %v326 = vld [vmem:[#allocation2 + $0x58] sm:$0xff]
      %v327 = vld [vmem:[#allocation2 + $0x60] sm:$0xff]
      %v328 = vld [vmem:[#allocation2 + $0x68] sm:$0xff]
      %v329 = vld [vmem:[#allocation2 + $0x70] sm:$0xff]
      %v330 = vld [vmem:[#allocation2 + $0x78] sm:$0xff]
      %v331 = vld [vmem:[%s2] sm:$0xff]
      %v332 = vld [vmem:[%s2 + $0x8] sm:$0xff]
      %v333 = vld [vmem:[%s2 + $0x10] sm:$0xff]
      %v334 = vld [vmem:[%s2 + $0x18] sm:$0xff]
      %v335 = vld [vmem:[%s2 + $0x20] sm:$0xff]
      %v336 = vld [vmem:[%s2 + $0x28] sm:$0xff]
      %v337 = vld [vmem:[%s2 + $0x30] sm:$0xff]
      %v338 = vld [vmem:[%s2 + $0x38] sm:$0xff]
      %v339 = vld [vmem:[%s2 + $0x40] sm:$0xff]
      %v340 = vld [vmem:[%s2 + $0x48] sm:$0xff]
      %v341 = vld [vmem:[%s2 + $0x50] sm:$0xff]
      %v342 = vld [vmem:[%s2 + $0x58] sm:$0xff]
      %v343 = vld [vmem:[%s2 + $0x60] sm:$0xff]
      %v344 = vld [vmem:[%s2 + $0x68] sm:$0xff]
      %v345 = vld [vmem:[%s2 + $0x70] sm:$0xff]
      %v346 = vld [vmem:[%s2 + $0x78] sm:$0xff]
      %348 = vset.pattern.permute.xlu0 0
      %349 = vperm.xlu0 %348, %v331
      %v350 = vpop.permute.xlu0 %349
      %353 = vset.pattern.permute.xlu0 0
      %354 = vperm.xlu0 %353, %v332
      %v355 = vpop.permute.xlu0 %354
      %358 = vset.pattern.permute.xlu0 0
      %359 = vperm.xlu0 %358, %v333
      %v360 = vpop.permute.xlu0 %359
      %363 = vset.pattern.permute.xlu0 0
      %364 = vperm.xlu0 %363, %v334
      %v365 = vpop.permute.xlu0 %364
      %368 = vset.pattern.permute.xlu0 0
      %369 = vperm.xlu0 %368, %v335
      %v370 = vpop.permute.xlu0 %369
      %373 = vset.pattern.permute.xlu0 0
      %374 = vperm.xlu0 %373, %v336
      %v375 = vpop.permute.xlu0 %374
      %378 = vset.pattern.permute.xlu0 0
      %379 = vperm.xlu0 %378, %v337
      %v380 = vpop.permute.xlu0 %379
      %383 = vset.pattern.permute.xlu0 0
      %384 = vperm.xlu0 %383, %v338
      %v385 = vpop.permute.xlu0 %384
      %388 = vset.pattern.permute.xlu0 0
      %389 = vperm.xlu0 %388, %v339
      %v390 = vpop.permute.xlu0 %389
      %393 = vset.pattern.permute.xlu0 0
      %394 = vperm.xlu0 %393, %v340
      %v395 = vpop.permute.xlu0 %394
      %398 = vset.pattern.permute.xlu0 0
      %399 = vperm.xlu0 %398, %v341
      %v400 = vpop.permute.xlu0 %399
      %403 = vset.pattern.permute.xlu0 0
      %404 = vperm.xlu0 %403, %v342
      %v405 = vpop.permute.xlu0 %404
      %408 = vset.pattern.permute.xlu0 0
      %409 = vperm.xlu0 %408, %v343
      %v410 = vpop.permute.xlu0 %409
      %413 = vset.pattern.permute.xlu0 0
      %414 = vperm.xlu0 %413, %v344
      %v415 = vpop.permute.xlu0 %414
      %418 = vset.pattern.permute.xlu0 0
      %419 = vperm.xlu0 %418, %v345
      %v420 = vpop.permute.xlu0 %419
      %423 = vset.pattern.permute.xlu0 0
      %424 = vperm.xlu0 %423, %v346
      %v425 = vpop.permute.xlu0 %424
      %v427 = vmul.f32 %v315, %v350
      %v428 = vmul.f32 %v316, %v355
      %v429 = vmul.f32 %v317, %v360
      %v430 = vmul.f32 %v318, %v365
      %v431 = vmul.f32 %v319, %v370
      %v432 = vmul.f32 %v320, %v375
      %v433 = vmul.f32 %v321, %v380
      %v434 = vmul.f32 %v322, %v385
      %v435 = vmul.f32 %v323, %v390
      %v436 = vmul.f32 %v324, %v395
      %v437 = vmul.f32 %v325, %v400
      %v438 = vmul.f32 %v326, %v405
      %v439 = vmul.f32 %v327, %v410
      %v440 = vmul.f32 %v328, %v415
      %v441 = vmul.f32 %v329, %v420
      %v442 = vmul.f32 %v330, %v425
      %s443 = smul.u32 0, 128
      %s444 = sshra.s32 %s443, 3
      %s445 = sand.u32 %s443, 7
      %s446 = smul.addr %s444, 4
      %s447 = scalar_lea.vmem [#allocation6], %s446
      %v448 = vld [vmem:[%s447] sm:$0xf]
      %v449 = vld [vmem:[%s447 + $0x4] sm:$0xf]
      %v450 = vld [vmem:[%s447 + $0x8] sm:$0xf]
      %v451 = vld [vmem:[%s447 + $0xc] sm:$0xf]
      %v452 = vld [vmem:[%s447 + $0x10] sm:$0xf]
      %v453 = vld [vmem:[%s447 + $0x14] sm:$0xf]
      %v454 = vld [vmem:[%s447 + $0x18] sm:$0xf]
      %v455 = vld [vmem:[%s447 + $0x1c] sm:$0xf]
      %v456 = vld [vmem:[%s447 + $0x20] sm:$0xf]
      %v457 = vld [vmem:[%s447 + $0x24] sm:$0xf]
      %v458 = vld [vmem:[%s447 + $0x28] sm:$0xf]
      %v459 = vld [vmem:[%s447 + $0x2c] sm:$0xf]
      %v460 = vld [vmem:[%s447 + $0x30] sm:$0xf]
      %v461 = vld [vmem:[%s447 + $0x34] sm:$0xf]
      %v462 = vld [vmem:[%s447 + $0x38] sm:$0xf]
      %v463 = vld [vmem:[%s447 + $0x3c] sm:$0xf]
      %v464 = vunpack.c.l.bf16 %v448
      %v465 = vunpack.c.l.bf16 %v449
      %v466 = vunpack.c.l.bf16 %v450
      %v467 = vunpack.c.l.bf16 %v451
      %v468 = vunpack.c.l.bf16 %v452
      %v469 = vunpack.c.l.bf16 %v453
      %v470 = vunpack.c.l.bf16 %v454
      %v471 = vunpack.c.l.bf16 %v455
      %v472 = vunpack.c.l.bf16 %v456
      %v473 = vunpack.c.l.bf16 %v457
      %v474 = vunpack.c.l.bf16 %v458
      %v475 = vunpack.c.l.bf16 %v459
      %v476 = vunpack.c.l.bf16 %v460
      %v477 = vunpack.c.l.bf16 %v461
      %v478 = vunpack.c.l.bf16 %v462
      %v479 = vunpack.c.l.bf16 %v463
      %v480 = vld [vmem:[%s3] sm:$0xff]
      %v481 = vld [vmem:[%s3 + $0x8] sm:$0xff]
      %v482 = vld [vmem:[%s3 + $0x10] sm:$0xff]
      %v483 = vld [vmem:[%s3 + $0x18] sm:$0xff]
      %v484 = vld [vmem:[%s3 + $0x20] sm:$0xff]
      %v485 = vld [vmem:[%s3 + $0x28] sm:$0xff]
      %v486 = vld [vmem:[%s3 + $0x30] sm:$0xff]
      %v487 = vld [vmem:[%s3 + $0x38] sm:$0xff]
      %v488 = vld [vmem:[%s3 + $0x40] sm:$0xff]
      %v489 = vld [vmem:[%s3 + $0x48] sm:$0xff]
      %v490 = vld [vmem:[%s3 + $0x50] sm:$0xff]
      %v491 = vld [vmem:[%s3 + $0x58] sm:$0xff]
      %v492 = vld [vmem:[%s3 + $0x60] sm:$0xff]
      %v493 = vld [vmem:[%s3 + $0x68] sm:$0xff]
      %v494 = vld [vmem:[%s3 + $0x70] sm:$0xff]
      %v495 = vld [vmem:[%s3 + $0x78] sm:$0xff]
      %v496 = vld [vmem:[#allocation8] sm:$0xff]
      %v497 = vld [vmem:[#allocation8 + $0x8] sm:$0xff]
      %v498 = vld [vmem:[#allocation8 + $0x10] sm:$0xff]
      %v499 = vld [vmem:[#allocation8 + $0x18] sm:$0xff]
      %v500 = vld [vmem:[#allocation8 + $0x20] sm:$0xff]
      %v501 = vld [vmem:[#allocation8 + $0x28] sm:$0xff]
      %v502 = vld [vmem:[#allocation8 + $0x30] sm:$0xff]
      %v503 = vld [vmem:[#allocation8 + $0x38] sm:$0xff]
      %v504 = vld [vmem:[#allocation8 + $0x40] sm:$0xff]
      %v505 = vld [vmem:[#allocation8 + $0x48] sm:$0xff]
      %v506 = vld [vmem:[#allocation8 + $0x50] sm:$0xff]
      %v507 = vld [vmem:[#allocation8 + $0x58] sm:$0xff]
      %v508 = vld [vmem:[#allocation8 + $0x60] sm:$0xff]
      %v509 = vld [vmem:[#allocation8 + $0x68] sm:$0xff]
      %v510 = vld [vmem:[#allocation8 + $0x70] sm:$0xff]
      %v511 = vld [vmem:[#allocation8 + $0x78] sm:$0xff]
      %512 = vmatprep.subr.mxu0 0.0
      %513 = vmatpush1.msra.mxu0 %v496
      %514 = vmatprep.subr.mxu0 0.0
      %515 = vmatpush1.msra.mxu0 %v497
      %516 = vmatprep.subr.mxu0 0.0
      %517 = vmatpush1.msra.mxu0 %v498
      %518 = vmatprep.subr.mxu0 0.0
      %519 = vmatpush1.msra.mxu0 %v499
      %520 = vmatprep.subr.mxu0 0.0
      %521 = vmatpush1.msra.mxu0 %v500
      %522 = vmatprep.subr.mxu0 0.0
      %523 = vmatpush1.msra.mxu0 %v501
      %524 = vmatprep.subr.mxu0 0.0
      %525 = vmatpush1.msra.mxu0 %v502
      %526 = vmatprep.subr.mxu0 0.0
      %527 = vmatpush1.msra.mxu0 %v503
      %528 = vmatprep.subr.mxu0 0.0
      %529 = vmatpush1.msra.mxu0 %v504
      %530 = vmatprep.subr.mxu0 0.0
      %531 = vmatpush1.msra.mxu0 %v505
      %532 = vmatprep.subr.mxu0 0.0
      %533 = vmatpush1.msra.mxu0 %v506
      %534 = vmatprep.subr.mxu0 0.0
      %535 = vmatpush1.msra.mxu0 %v507
      %536 = vmatprep.subr.mxu0 0.0
      %537 = vmatpush1.msra.mxu0 %v508
      %538 = vmatprep.subr.mxu0 0.0
      %539 = vmatpush1.msra.mxu0 %v509
      %540 = vmatprep.subr.mxu0 0.0
      %541 = vmatpush1.msra.mxu0 %v510
      %542 = vmatprep.subr.mxu0 0.0
      %543 = vmatpush1.msra.mxu0 %v511
      %544 = vmatprep.subr.mxu0 0.0
      %545 = vmatpush1.msra.mxu0 0.0
      %546 = vmatprep.subr.mxu0 0.0
      %547 = vmatpush1.msra.mxu0 0.0
      %548 = vmatprep.subr.mxu0 0.0
      %549 = vmatpush1.msra.mxu0 0.0
      %550 = vmatprep.subr.mxu0 0.0
      %551 = vmatpush1.msra.mxu0 0.0
      %552 = vmatprep.subr.mxu0 0.0
      %553 = vmatpush1.msra.mxu0 0.0
      %554 = vmatprep.subr.mxu0 0.0
      %555 = vmatpush1.msra.mxu0 0.0
      %556 = vmatprep.subr.mxu0 0.0
      %557 = vmatpush1.msra.mxu0 0.0
      %558 = vmatprep.subr.mxu0 0.0
      %559 = vmatpush1.msra.mxu0 0.0
      %560 = vmatprep.subr.mxu0 0.0
      %561 = vmatpush1.msra.mxu0 0.0
      %562 = vmatprep.subr.mxu0 0.0
      %563 = vmatpush1.msra.mxu0 0.0
      %564 = vmatprep.subr.mxu0 0.0
      %565 = vmatpush1.msra.mxu0 0.0
      %566 = vmatprep.subr.mxu0 0.0
      %567 = vmatpush1.msra.mxu0 0.0
      %568 = vmatprep.subr.mxu0 0.0
      %569 = vmatpush1.msra.mxu0 0.0
      %570 = vmatprep.subr.mxu0 0.0
      %571 = vmatpush1.msra.mxu0 0.0
      %572 = vmatprep.subr.mxu0 0.0
      %573 = vmatpush1.msra.mxu0 0.0
      %574 = vmatprep.subr.mxu0 0.0
      %575 = vmatpush1.msra.mxu0 0.0
      %576 = vmatprep.mubr.f32.mxu0 0.0
      %577 = vmatmul.mubr.f32.gmra.mrb[0].mxu0 %v464
      %v578 = vpop.f32.mrb[0].mxu0
      %v579 = vadd.f32 0.0, %v578
      %v580 = vpop.f32.mrb[0].mxu0
      %581 = vmatprep.mubr.f32.mxu0 0.0
      %582 = vmatmul.mubr.f32.gmra.mrb[0].mxu0 %v465
      %v583 = vpop.f32.mrb[0].mxu0
      %v584 = vadd.f32 0.0, %v583
      %v585 = vpop.f32.mrb[0].mxu0
      %586 = vmatprep.mubr.f32.mxu0 0.0
      %587 = vmatmul.mubr.f32.gmra.mrb[0].mxu0 %v466
      %v588 = vpop.f32.mrb[0].mxu0
      %v589 = vadd.f32 0.0, %v588
      %v590 = vpop.f32.mrb[0].mxu0
      %591 = vmatprep.mubr.f32.mxu0 0.0
      %592 = vmatmul.mubr.f32.gmra.mrb[0].mxu0 %v467
      %v593 = vpop.f32.mrb[0].mxu0
      %v594 = vadd.f32 0.0, %v593
      %v595 = vpop.f32.mrb[0].mxu0
      %596 = vmatprep.mubr.f32.mxu0 0.0
      %597 = vmatmul.mubr.f32.gmra.mrb[0].mxu0 %v468
      %v598 = vpop.f32.mrb[0].mxu0
      %v599 = vadd.f32 0.0, %v598
      %v600 = vpop.f32.mrb[0].mxu0
      %601 = vmatprep.mubr.f32.mxu0 0.0
      %602 = vmatmul.mubr.f32.gmra.mrb[0].mxu0 %v469
      %v603 = vpop.f32.mrb[0].mxu0
      %v604 = vadd.f32 0.0, %v603
      %v605 = vpop.f32.mrb[0].mxu0
      %606 = vmatprep.mubr.f32.mxu0 0.0
      %607 = vmatmul.mubr.f32.gmra.mrb[0].mxu0 %v470
      %v608 = vpop.f32.mrb[0].mxu0
      %v609 = vadd.f32 0.0, %v608
      %v610 = vpop.f32.mrb[0].mxu0
      %611 = vmatprep.mubr.f32.mxu0 0.0
      %612 = vmatmul.mubr.f32.gmra.mrb[0].mxu0 %v471
      %v613 = vpop.f32.mrb[0].mxu0
      %v614 = vadd.f32 0.0, %v613
      %v615 = vpop.f32.mrb[0].mxu0
      %616 = vmatprep.mubr.f32.mxu0 0.0
      %617 = vmatmul.mubr.f32.gmra.mrb[0].mxu0 %v472
      %v618 = vpop.f32.mrb[0].mxu0
      %v619 = vadd.f32 0.0, %v618
      %v620 = vpop.f32.mrb[0].mxu0
      %621 = vmatprep.mubr.f32.mxu0 0.0
      %622 = vmatmul.mubr.f32.gmra.mrb[0].mxu0 %v473
      %v623 = vpop.f32.mrb[0].mxu0
      %v624 = vadd.f32 0.0, %v623
      %v625 = vpop.f32.mrb[0].mxu0
      %626 = vmatprep.mubr.f32.mxu0 0.0
      %627 = vmatmul.mubr.f32.gmra.mrb[0].mxu0 %v474
      %v628 = vpop.f32.mrb[0].mxu0
      %v629 = vadd.f32 0.0, %v628
      %v630 = vpop.f32.mrb[0].mxu0
      %631 = vmatprep.mubr.f32.mxu0 0.0
      %632 = vmatmul.mubr.f32.gmra.mrb[0].mxu0 %v475
      %v633 = vpop.f32.mrb[0].mxu0
      %v634 = vadd.f32 0.0, %v633
      %v635 = vpop.f32.mrb[0].mxu0
      %636 = vmatprep.mubr.f32.mxu0 0.0
      %637 = vmatmul.mubr.f32.gmra.mrb[0].mxu0 %v476
      %v638 = vpop.f32.mrb[0].mxu0
      %v639 = vadd.f32 0.0, %v638
      %v640 = vpop.f32.mrb[0].mxu0
      %641 = vmatprep.mubr.f32.mxu0 0.0
      %642 = vmatmul.mubr.f32.gmra.mrb[0].mxu0 %v477
      %v643 = vpop.f32.mrb[0].mxu0
      %v644 = vadd.f32 0.0, %v643
      %v645 = vpop.f32.mrb[0].mxu0
      %646 = vmatprep.mubr.f32.mxu0 0.0
      %647 = vmatmul.mubr.f32.gmra.mrb[0].mxu0 %v478
      %v648 = vpop.f32.mrb[0].mxu0
      %v649 = vadd.f32 0.0, %v648
      %v650 = vpop.f32.mrb[0].mxu0
      %651 = vmatprep.mubr.f32.mxu0 0.0
      %652 = vmatmul.mubr.f32.gmra.mrb[0].mxu0 %v479
      %v653 = vpop.f32.mrb[0].mxu0
      %v654 = vadd.f32 0.0, %v653
      %v655 = vpop.f32.mrb[0].mxu0
      %656 = vdwg.mxu0
      %657 = vmatprep.subr.mxu0 0.0
      %658 = vmatpush1.msra.mxu0 %v480
      %659 = vmatprep.subr.mxu0 0.0
      %660 = vmatpush1.msra.mxu0 %v481
      %661 = vmatprep.subr.mxu0 0.0
      %662 = vmatpush1.msra.mxu0 %v482
      %663 = vmatprep.subr.mxu0 0.0
      %664 = vmatpush1.msra.mxu0 %v483
      %665 = vmatprep.subr.mxu0 0.0
      %666 = vmatpush1.msra.mxu0 %v484
      %667 = vmatprep.subr.mxu0 0.0
      %668 = vmatpush1.msra.mxu0 %v485
      %669 = vmatprep.subr.mxu0 0.0
      %670 = vmatpush1.msra.mxu0 %v486
      %671 = vmatprep.subr.mxu0 0.0
      %672 = vmatpush1.msra.mxu0 %v487
      %673 = vmatprep.subr.mxu0 0.0
      %674 = vmatpush1.msra.mxu0 %v488
      %675 = vmatprep.subr.mxu0 0.0
      %676 = vmatpush1.msra.mxu0 %v489
      %677 = vmatprep.subr.mxu0 0.0
      %678 = vmatpush1.msra.mxu0 %v490
      %679 = vmatprep.subr.mxu0 0.0
      %680 = vmatpush1.msra.mxu0 %v491
      %681 = vmatprep.subr.mxu0 0.0
      %682 = vmatpush1.msra.mxu0 %v492
      %683 = vmatprep.subr.mxu0 0.0
      %684 = vmatpush1.msra.mxu0 %v493
      %685 = vmatprep.subr.mxu0 0.0
      %686 = vmatpush1.msra.mxu0 %v494
      %687 = vmatprep.subr.mxu0 0.0
      %688 = vmatpush1.msra.mxu0 %v495
      %689 = vmatprep.subr.mxu0 0.0
      %690 = vmatpush1.msra.mxu0 0.0
      %691 = vmatprep.subr.mxu0 0.0
      %692 = vmatpush1.msra.mxu0 0.0
      %693 = vmatprep.subr.mxu0 0.0
      %694 = vmatpush1.msra.mxu0 0.0
      %695 = vmatprep.subr.mxu0 0.0
      %696 = vmatpush1.msra.mxu0 0.0
      %697 = vmatprep.subr.mxu0 0.0
      %698 = vmatpush1.msra.mxu0 0.0
      %699 = vmatprep.subr.mxu0 0.0
      %700 = vmatpush1.msra.mxu0 0.0
      %701 = vmatprep.subr.mxu0 0.0
      %702 = vmatpush1.msra.mxu0 0.0
      %703 = vmatprep.subr.mxu0 0.0
      %704 = vmatpush1.msra.mxu0 0.0
      %705 = vmatprep.subr.mxu0 0.0
      %706 = vmatpush1.msra.mxu0 0.0
      %707 = vmatprep.subr.mxu0 0.0
      %708 = vmatpush1.msra.mxu0 0.0
      %709 = vmatprep.subr.mxu0 0.0
      %710 = vmatpush1.msra.mxu0 0.0
      %711 = vmatprep.subr.mxu0 0.0
      %712 = vmatpush1.msra.mxu0 0.0
      %713 = vmatprep.subr.mxu0 0.0
      %714 = vmatpush1.msra.mxu0 0.0
      %715 = vmatprep.subr.mxu0 0.0
      %716 = vmatpush1.msra.mxu0 0.0
      %717 = vmatprep.subr.mxu0 0.0
      %718 = vmatpush1.msra.mxu0 0.0
      %719 = vmatprep.subr.mxu0 0.0
      %720 = vmatpush1.msra.mxu0 0.0
      %721 = vmatprep.mubr.f32.mxu0 0.0
      %722 = vmatmul.mubr.f32.gmra.mrb[0].mxu0 %v427
      %v723 = vpop.f32.mrb[0].mxu0
      %v724 = vadd.f32 %v579, %v723
      %v725 = vpop.f32.mrb[0].mxu0
      %726 = vmatprep.mubr.f32.mxu0 0.0
      %727 = vmatmul.mubr.f32.gmra.mrb[0].mxu0 %v428
      %v728 = vpop.f32.mrb[0].mxu0
      %v729 = vadd.f32 %v584, %v728
      %v730 = vpop.f32.mrb[0].mxu0
      %731 = vmatprep.mubr.f32.mxu0 0.0
      %732 = vmatmul.mubr.f32.gmra.mrb[0].mxu0 %v429
      %v733 = vpop.f32.mrb[0].mxu0
      %v734 = vadd.f32 %v589, %v733
      %v735 = vpop.f32.mrb[0].mxu0
      %736 = vmatprep.mubr.f32.mxu0 0.0
      %737 = vmatmul.mubr.f32.gmra.mrb[0].mxu0 %v430
      %v738 = vpop.f32.mrb[0].mxu0
      %v739 = vadd.f32 %v594, %v738
      %v740 = vpop.f32.mrb[0].mxu0
      %741 = vmatprep.mubr.f32.mxu0 0.0
      %742 = vmatmul.mubr.f32.gmra.mrb[0].mxu0 %v431
      %v743 = vpop.f32.mrb[0].mxu0
      %v744 = vadd.f32 %v599, %v743
      %v745 = vpop.f32.mrb[0].mxu0
      %746 = vmatprep.mubr.f32.mxu0 0.0
      %747 = vmatmul.mubr.f32.gmra.mrb[0].mxu0 %v432
      %v748 = vpop.f32.mrb[0].mxu0
      %v749 = vadd.f32 %v604, %v748
      %v750 = vpop.f32.mrb[0].mxu0
      %751 = vmatprep.mubr.f32.mxu0 0.0
      %752 = vmatmul.mubr.f32.gmra.mrb[0].mxu0 %v433
      %v753 = vpop.f32.mrb[0].mxu0
      %v754 = vadd.f32 %v609, %v753
      %v755 = vpop.f32.mrb[0].mxu0
      %756 = vmatprep.mubr.f32.mxu0 0.0
      %757 = vmatmul.mubr.f32.gmra.mrb[0].mxu0 %v434
      %v758 = vpop.f32.mrb[0].mxu0
      %v759 = vadd.f32 %v614, %v758
      %v760 = vpop.f32.mrb[0].mxu0
      %761 = vmatprep.mubr.f32.mxu0 0.0
      %762 = vmatmul.mubr.f32.gmra.mrb[0].mxu0 %v435
      %v763 = vpop.f32.mrb[0].mxu0
      %v764 = vadd.f32 %v619, %v763
      %v765 = vpop.f32.mrb[0].mxu0
      %766 = vmatprep.mubr.f32.mxu0 0.0
      %767 = vmatmul.mubr.f32.gmra.mrb[0].mxu0 %v436
      %v768 = vpop.f32.mrb[0].mxu0
      %v769 = vadd.f32 %v624, %v768
      %v770 = vpop.f32.mrb[0].mxu0
      %771 = vmatprep.mubr.f32.mxu0 0.0
      %772 = vmatmul.mubr.f32.gmra.mrb[0].mxu0 %v437
      %v773 = vpop.f32.mrb[0].mxu0
      %v774 = vadd.f32 %v629, %v773
      %v775 = vpop.f32.mrb[0].mxu0
      %776 = vmatprep.mubr.f32.mxu0 0.0
      %777 = vmatmul.mubr.f32.gmra.mrb[0].mxu0 %v438
      %v778 = vpop.f32.mrb[0].mxu0
      %v779 = vadd.f32 %v634, %v778
      %v780 = vpop.f32.mrb[0].mxu0
      %781 = vmatprep.mubr.f32.mxu0 0.0
      %782 = vmatmul.mubr.f32.gmra.mrb[0].mxu0 %v439
      %v783 = vpop.f32.mrb[0].mxu0
      %v784 = vadd.f32 %v639, %v783
      %v785 = vpop.f32.mrb[0].mxu0
      %786 = vmatprep.mubr.f32.mxu0 0.0
      %787 = vmatmul.mubr.f32.gmra.mrb[0].mxu0 %v440
      %v788 = vpop.f32.mrb[0].mxu0
      %v789 = vadd.f32 %v644, %v788
      %v790 = vpop.f32.mrb[0].mxu0
      %791 = vmatprep.mubr.f32.mxu0 0.0
      %792 = vmatmul.mubr.f32.gmra.mrb[0].mxu0 %v441
      %v793 = vpop.f32.mrb[0].mxu0
      %v794 = vadd.f32 %v649, %v793
      %v795 = vpop.f32.mrb[0].mxu0
      %796 = vmatprep.mubr.f32.mxu0 0.0
      %797 = vmatmul.mubr.f32.gmra.mrb[0].mxu0 %v442
      %v798 = vpop.f32.mrb[0].mxu0
      %v799 = vadd.f32 %v654, %v798
      %v800 = vpop.f32.mrb[0].mxu0
      %801 = vdwg.mxu0
      %v802 = vld [vmem:[%s5] sm:$0x1]
      %v804 = vlaneseq
      %v805 = vshrl.u32 %v804, 7
      %v806 = vsub.s32 0, %v805
      %v807 = vrot.slane %v802, %v806
      %v809 = vadd.f32 %v724, %v807
      %v810 = vadd.f32 %v729, %v807
      %v811 = vadd.f32 %v734, %v807
      %v812 = vadd.f32 %v739, %v807
      %v813 = vadd.f32 %v744, %v807
      %v814 = vadd.f32 %v749, %v807
      %v815 = vadd.f32 %v754, %v807
      %v816 = vadd.f32 %v759, %v807
      %v817 = vadd.f32 %v764, %v807
      %v818 = vadd.f32 %v769, %v807
      %v819 = vadd.f32 %v774, %v807
      %v820 = vadd.f32 %v779, %v807
      %v821 = vadd.f32 %v784, %v807
      %v822 = vadd.f32 %v789, %v807
      %v823 = vadd.f32 %v794, %v807
      %v824 = vadd.f32 %v799, %v807
      %v825 = vmax.f32 %v809, 0.0
      %v826 = vmax.f32 %v810, 0.0
      %v827 = vmax.f32 %v811, 0.0
      %v828 = vmax.f32 %v812, 0.0
      %v829 = vmax.f32 %v813, 0.0
      %v830 = vmax.f32 %v814, 0.0
      %v831 = vmax.f32 %v815, 0.0
      %v832 = vmax.f32 %v816, 0.0
      %v833 = vmax.f32 %v817, 0.0
      %v834 = vmax.f32 %v818, 0.0
      %v835 = vmax.f32 %v819, 0.0
      %v836 = vmax.f32 %v820, 0.0
      %v837 = vmax.f32 %v821, 0.0
      %v838 = vmax.f32 %v822, 0.0
      %v839 = vmax.f32 %v823, 0.0
      %v840 = vmax.f32 %v824, 0.0
      %v841 = vpack.c.bf16 %v826, %v825
      %v842 = vpack.c.bf16 %v828, %v827
      %v843 = vpack.c.bf16 %v830, %v829
      %v844 = vpack.c.bf16 %v832, %v831
      %v845 = vpack.c.bf16 %v834, %v833
      %v846 = vpack.c.bf16 %v836, %v835
      %v847 = vpack.c.bf16 %v838, %v837
      %v848 = vpack.c.bf16 %v840, %v839
      %v857 = vunpack.c.l.b16 %v841
      %v858 = vunpack.c.h.b16 %v841
      %v859 = vunpack.c.l.b16 %v842
      %v860 = vunpack.c.h.b16 %v842
      %v861 = vunpack.c.l.b16 %v843
      %v862 = vunpack.c.h.b16 %v843
      %v863 = vunpack.c.l.b16 %v844
      %v864 = vunpack.c.h.b16 %v844
      %v865 = vunpack.c.l.b16 %v845
      %v866 = vunpack.c.h.b16 %v845
      %v867 = vunpack.c.l.b16 %v846
      %v868 = vunpack.c.h.b16 %v846
      %v869 = vunpack.c.l.b16 %v847
      %v870 = vunpack.c.h.b16 %v847
      %v871 = vunpack.c.l.b16 %v848
      %v872 = vunpack.c.h.b16 %v848
      %v873 = vpack.c.b16 %v857, %v857
      %v874 = vpack.c.b16 %v858, %v858
      %v875 = vpack.c.b16 %v859, %v859
      %v876 = vpack.c.b16 %v860, %v860
      %v877 = vpack.c.b16 %v861, %v861
      %v878 = vpack.c.b16 %v862, %v862
      %v879 = vpack.c.b16 %v863, %v863
      %v880 = vpack.c.b16 %v864, %v864
      %v881 = vpack.c.b16 %v865, %v865
      %v882 = vpack.c.b16 %v866, %v866
      %v883 = vpack.c.b16 %v867, %v867
      %v884 = vpack.c.b16 %v868, %v868
      %v885 = vpack.c.b16 %v869, %v869
      %v886 = vpack.c.b16 %v870, %v870
      %v887 = vpack.c.b16 %v871, %v871
      %v888 = vpack.c.b16 %v872, %v872
      %905 = vst [vmem:[#allocation9] sm:$0xf] %v873
      %906 = vst [vmem:[#allocation9 + $0x4] sm:$0xf] %v874
      %907 = vst [vmem:[#allocation9 + $0x8] sm:$0xf] %v875
      %908 = vst [vmem:[#allocation9 + $0xc] sm:$0xf] %v876
      %909 = vst [vmem:[#allocation9 + $0x10] sm:$0xf] %v877
      %910 = vst [vmem:[#allocation9 + $0x14] sm:$0xf] %v878
      %911 = vst [vmem:[#allocation9 + $0x18] sm:$0xf] %v879
      %912 = vst [vmem:[#allocation9 + $0x1c] sm:$0xf] %v880
      %913 = vst [vmem:[#allocation9 + $0x20] sm:$0xf] %v881
      %914 = vst [vmem:[#allocation9 + $0x24] sm:$0xf] %v882
      %915 = vst [vmem:[#allocation9 + $0x28] sm:$0xf] %v883
      %916 = vst [vmem:[#allocation9 + $0x2c] sm:$0xf] %v884
      %917 = vst [vmem:[#allocation9 + $0x30] sm:$0xf] %v885
      %918 = vst [vmem:[#allocation9 + $0x34] sm:$0xf] %v886
      %919 = vst [vmem:[#allocation9 + $0x38] sm:$0xf] %v887
      %920 = vst [vmem:[#allocation9 + $0x3c] sm:$0xf] %v888
    $region45: #{tpu_custom_call.1} parent=1 // pred_fallthru
      _
    // Predicated region
    $region46: #{tpu_custom_call.1} parent=1 // pred_check
      _
    $region47: #{tpu_custom_call.1} parent=1 // pred_check_branch
      %922 = sbr.rel (0) target = $region49
    $region48: #{tpu_custom_call.1} parent=1 // pred_region
      %s924 = ssub.s32 1024, 1024
      %925 = vsyncadd [#allocation5], %s924
      %s926 = sshll.u32 [#allocation9], 4
      %s927 = int_to_ptr.vmem [resolvable:$true] %s926
      %932 = dma.vmem_to_hbm [thread:$0]  %s927, 1024, %s6, [#allocation5], 64, 64, 4
    $region49: #{tpu_custom_call.1} parent=1 // pred_fallthru
      _
    // Predicated region
    $region50: #{tpu_custom_call.1} parent=1 // pred_check
      _
    $region51: #{tpu_custom_call.1} parent=1 // pred_check_branch
      %934 = sbr.rel (0) target = $region53
    $region52: #{tpu_custom_call.1} parent=1 // pred_region
      %935 = dma.done [#allocation5], 1024
    $region53: #{tpu_custom_call.1} parent=1 // pred_fallthru
      _
    %936 = vsyncpa [#allocation4], 1
    %937 = vsyncpa [#allocation7], 1
    %938 = vsyncpa [#allocation5], 1

</llo_original>
